<compile_context>
chip_gen: v6e
topology: v6e:2x2x1
jax: 0.10.0
libtpu: 0.0.40
codegen_flags: <defaults>
</compile_context>

<pallas_src>
import jax
import jax.numpy as jnp
import numpy as np
from jax.experimental import pallas as pl
from jax.experimental.pallas import tpu as pltpu


def _round_up(x, m):
    return (x + m - 1) // m * m


def _mlp_base_kernel(x_ref, w1_ref, b1_ref, w2_ref, b2_ref, vw_ref, vb_ref,
                     out_ref):
    H2 = out_ref.shape[-1]          # 2*H (lane-dense: 128 for hidden_size=64)
    H = H2 // 2
    tb = out_ref.shape[0]

    x = x_ref[...]

    # Fused layer 1: [actor | critic] trunks in one (tb,K)@(K,2H) matmul.
    h1 = jnp.tanh(
        jnp.dot(x, w1_ref[...], preferred_element_type=jnp.float32)
        + b1_ref[...])

    # Fused layer 2: block-diagonal (2H,2H) keeps the trunks independent.
    h2 = jnp.tanh(
        jnp.dot(h1.astype(w2_ref.dtype), w2_ref[...],
                preferred_element_type=jnp.float32)
        + b2_ref[...])

    # critic_linear head as VPU multiply + lane reduction (vw is zero over the
    # actor lanes, so only the critic half contributes).
    value = jnp.sum(h2 * vw_ref[...], axis=-1, keepdims=True) + vb_ref[...]

    # Single lane-dense output slab: actor hidden in lanes [0,H), value
    # broadcast over lanes [H,2H).  Sliced apart in the wrapper.
    out_ref[...] = jnp.concatenate(
        [h2[:, :H], jnp.broadcast_to(value, (tb, H))], axis=-1)


def mlp_base_forward(inputs, rnn_hxs, masks, params, *, tile_b=1024,
                     compute_dtype=jnp.float32):
    """MLPBase.forward (recurrent=False). Returns (value, hidden_actor, rnn_hxs)."""
    del masks  # masks only feed the recurrent (GRU) path, which is disabled here.
    # TODO(synk): recurrent GRU path (_forward_gru) not implemented; this config
    # matches MLPBase(recurrent=False), where rnn_hxs passes through unchanged.

    f32 = jnp.float32
    x = inputs.astype(compute_dtype)
    B, K = x.shape
    H = params["actor_w1"].shape[1]
    H2 = 2 * H

    # ---- Fuse actor/critic trunks into lane-dense weights (done once, outside
    #      the pallas_call; 7 kernel inputs instead of 11) -------------------
    w1 = jnp.concatenate([params["actor_w1"], params["critic_w1"]],
                         axis=1).astype(compute_dtype)                 # (K, 2H)
    b1 = jnp.concatenate([params["actor_b1"], params["critic_b1"]]
                         ).reshape(1, H2).astype(f32)                  # (1, 2H)
    zhh = jnp.zeros((H, H), f32)
    w2 = jnp.concatenate([
        jnp.concatenate([params["actor_w2"].astype(f32), zhh], axis=1),
        jnp.concatenate([zhh, params["critic_w2"].astype(f32)], axis=1)],
        axis=0).astype(compute_dtype)                                  # (2H, 2H)
    b2 = jnp.concatenate([params["actor_b2"], params["critic_b2"]]
                         ).reshape(1, H2).astype(f32)                  # (1, 2H)
    # critic_linear weight, zero-padded over the actor lanes.
    vw = jnp.concatenate([jnp.zeros((H,), f32),
                          params["value_w"].reshape(H).astype(f32)]
                         ).reshape(1, H2)                              # (1, 2H)
    vb = params["value_b"].reshape(1, 1).astype(f32)                   # (1, 1)

    # ---- Batch tiling: big tiles, minimal padding, >= 2 steps on large
    #      batches so the parallel axis shards both v7x TensorCores ---------
    steps = max(1, pl.cdiv(B, tile_b))
    if steps == 1 and B >= 512:
        steps = 2
    tb = _round_up(pl.cdiv(B, steps), 8)
    Bp = tb * steps
    if Bp != B:
        x = jnp.pad(x, ((0, Bp - B), (0, 0)))

    resident = lambda shape: pl.BlockSpec(shape, lambda i: (0, 0))  # weights stay in VMEM

    out = pl.pallas_call(
        _mlp_base_kernel,
        out_shape=jax.ShapeDtypeStruct((Bp, H2), jnp.float32),
        grid=(steps,),
        in_specs=[
            pl.BlockSpec((tb, K), lambda i: (i, 0)),   # x: batch-tiled
            resident((K, H2)), resident((1, H2)),      # fused W1 | b1
            resident((H2, H2)), resident((1, H2)),     # block-diag W2 | b2
            resident((1, H2)), resident((1, 1)),       # value weight | bias
        ],
        out_specs=pl.BlockSpec((tb, H2), lambda i: (i, 0)),
        compiler_params=pltpu.CompilerParams(
            dimension_semantics=("parallel",),
            vmem_limit_bytes=32 * 1024 * 1024),
    )(x, w1, b1, w2, b2, vw, vb)

    hidden_actor = out[:B, :H]
    value = out[:B, H:H + 1]
    return value, hidden_actor, rnn_hxs


def _reference(inputs, params):
    """Pure-JAX reference identical to the PyTorch forward."""
    x = inputs
    hc = jnp.tanh(x @ params["critic_w1"] + params["critic_b1"])
    hc = jnp.tanh(hc @ params["critic_w2"] + params["critic_b2"])
    value = hc @ params["value_w"] + params["value_b"]
    ha = jnp.tanh(x @ params["actor_w1"] + params["actor_b1"])
    ha = jnp.tanh(ha @ params["actor_w2"] + params["actor_b2"])
    return value, ha


if __name__ == "__main__":
    key = jax.random.PRNGKey(0)
    NUM_INPUTS, HIDDEN = 32, 64
    keys = jax.random.split(key, 12)

    def _w(k, shape, fan_in):
        return jax.random.normal(k, shape, jnp.float32) / np.sqrt(fan_in)

    def _b(k, shape):
        return jax.random.normal(k, shape, jnp.float32) * 0.1

    params = {
        "critic_w1": _w(keys[1], (NUM_INPUTS, HIDDEN), NUM_INPUTS),
        "critic_b1": _b(keys[2], (HIDDEN,)),
        "critic_w2": _w(keys[3], (HIDDEN, HIDDEN), HIDDEN),
        "critic_b2": _b(keys[4], (HIDDEN,)),
        "actor_w1": _w(keys[5], (NUM_INPUTS, HIDDEN), NUM_INPUTS),
        "actor_b1": _b(keys[6], (HIDDEN,)),
        "actor_w2": _w(keys[7], (HIDDEN, HIDDEN), HIDDEN),
        "actor_b2": _b(keys[8], (HIDDEN,)),
        "value_w": _w(keys[9], (HIDDEN, 1), HIDDEN),
        "value_b": _b(keys[10], (1,)),
    }

    fwd = jax.jit(mlp_base_forward, static_argnames=("tile_b", "compute_dtype"))

    # (batch, tile_b, MXU operand dtype, tolerance)
    cases = [
        (8,    1024, jnp.float32,  2e-3),   # tiny batch, single grid step
        (1300, 512,  jnp.float32,  2e-3),   # multi-step grid + padded rows
        (8,    1024, jnp.bfloat16, 3e-2),   # bf16 MXU operands, f32 accumulate
    ]
    for B, tile_b, compute_dtype, tol in cases:
        inputs = jax.random.normal(keys[0], (B, NUM_INPUTS), jnp.float32)
        rnn_hxs = jnp.zeros((B, 1), jnp.float32)   # recurrent=False -> size 1
        masks = jnp.ones((B, 1), jnp.float32)

        value, hidden_actor, rnn_out = fwd(inputs, rnn_hxs, masks, params,
                                           tile_b=tile_b,
                                           compute_dtype=compute_dtype)
        jax.block_until_ready((value, hidden_actor, rnn_out))

        ref_value, ref_actor = _reference(inputs, params)
        np.testing.assert_allclose(np.asarray(value), np.asarray(ref_value),
                                   rtol=tol, atol=tol)
        np.testing.assert_allclose(np.asarray(hidden_actor),
                                   np.asarray(ref_actor), rtol=tol, atol=tol)
        assert value.shape == (B, 1)
        assert hidden_actor.shape == (B, HIDDEN)
        assert rnn_out.shape == rnn_hxs.shape

    print("KERNEL_OK")
</pallas_src>

<mosaic_0001>
module attributes {stable_mosaic.version = 11 : i64} {
  func.func @_mlp_base_kernel(%arg0: i32, %arg1: memref<8x32xf32, #tpu.memory_space<vmem>>, %arg2: memref<32x128xf32, #tpu.memory_space<vmem>>, %arg3: memref<1x128xf32, #tpu.memory_space<vmem>>, %arg4: memref<128x128xf32, #tpu.memory_space<vmem>>, %arg5: memref<1x128xf32, #tpu.memory_space<vmem>>, %arg6: memref<1x128xf32, #tpu.memory_space<vmem>>, %arg7: memref<1x1xf32, #tpu.memory_space<vmem>>, %arg8: memref<8x128xf32, #tpu.memory_space<vmem>>) attributes {dimension_semantics = [#tpu.dimension_semantics<parallel>], iteration_bounds = array<i64: 1>, scalar_prefetch = 0 : i64, scratch_operands = 0 : i64, tpu.core_type = #tpu.core_type<tc>, window_params = [{transform_indices = @transform_0, window_bounds = array<i64: 8, 32>}, {pipeline_mode = #tpu.pipeline_mode<synchronous>, transform_indices = @transform_1, window_bounds = array<i64: 32, 128>}, {pipeline_mode = #tpu.pipeline_mode<synchronous>, transform_indices = @transform_2, window_bounds = array<i64: 1, 128>}, {pipeline_mode = #tpu.pipeline_mode<synchronous>, transform_indices = @transform_3, window_bounds = array<i64: 128, 128>}, {pipeline_mode = #tpu.pipeline_mode<synchronous>, transform_indices = @transform_4, window_bounds = array<i64: 1, 128>}, {pipeline_mode = #tpu.pipeline_mode<synchronous>, transform_indices = @transform_5, window_bounds = array<i64: 1, 128>}, {pipeline_mode = #tpu.pipeline_mode<synchronous>, transform_indices = @transform_6, window_bounds = array<i64: 1, 1>}, {transform_indices = @transform_7, window_bounds = array<i64: 8, 128>}]} {
    %c0 = arith.constant 0 : index
    %c0_0 = arith.constant 0 : index
    %0 = vector.load %arg1[%c0, %c0_0] : memref<8x32xf32, #tpu.memory_space<vmem>>, vector<8x32xf32>
    %c0_1 = arith.constant 0 : index
    %c0_2 = arith.constant 0 : index
    %1 = vector.load %arg2[%c0_1, %c0_2] : memref<32x128xf32, #tpu.memory_space<vmem>>, vector<32x128xf32>
    %cst = arith.constant dense<0.000000e+00> : vector<8x128xf32>
    %2 = tpu.matmul %0, %1, %cst {dimension_numbers = #tpu.dot_dimension_numbers<[1], [0], [0], [1], [0, 0, 1, 1], [], []>} : vector<8x32xf32>, vector<32x128xf32>, vector<8x128xf32> -> vector<8x128xf32>
    %c0_3 = arith.constant 0 : index
    %c0_4 = arith.constant 0 : index
    %3 = vector.load %arg3[%c0_3, %c0_4] : memref<1x128xf32, #tpu.memory_space<vmem>>, vector<1x128xf32>
    %4 = vector.broadcast %3 : vector<1x128xf32> to vector<8x128xf32>
    %5 = arith.addf %2, %4 : vector<8x128xf32>
    %6 = math.tanh %5 : vector<8x128xf32>
    %c0_5 = arith.constant 0 : index
    %c0_6 = arith.constant 0 : index
    %7 = vector.load %arg4[%c0_5, %c0_6] : memref<128x128xf32, #tpu.memory_space<vmem>>, vector<128x128xf32>
    %cst_7 = arith.constant dense<0.000000e+00> : vector<8x128xf32>
    %8 = tpu.matmul %6, %7, %cst_7 {dimension_numbers = #tpu.dot_dimension_numbers<[1], [0], [0], [1], [0, 0, 1, 1], [], []>} : vector<8x128xf32>, vector<128x128xf32>, vector<8x128xf32> -> vector<8x128xf32>
    %c0_8 = arith.constant 0 : index
    %c0_9 = arith.constant 0 : index
    %9 = vector.load %arg5[%c0_8, %c0_9] : memref<1x128xf32, #tpu.memory_space<vmem>>, vector<1x128xf32>
    %10 = vector.broadcast %9 : vector<1x128xf32> to vector<8x128xf32>
    %11 = arith.addf %8, %10 : vector<8x128xf32>
    %12 = math.tanh %11 : vector<8x128xf32>
    %c0_10 = arith.constant 0 : index
    %c0_11 = arith.constant 0 : index
    %13 = vector.load %arg6[%c0_10, %c0_11] : memref<1x128xf32, #tpu.memory_space<vmem>>, vector<1x128xf32>
    %14 = vector.broadcast %13 : vector<1x128xf32> to vector<8x128xf32>
    %15 = arith.mulf %12, %14 : vector<8x128xf32>
    %cst_12 = arith.constant dense<0.000000e+00> : vector<8xf32>
    %16 = vector.multi_reduction <add>, %15, %cst_12 [1] : vector<8x128xf32> to vector<8xf32>
    %17 = vector.shape_cast %16 : vector<8xf32> to vector<8x1xf32>
    %c0_13 = arith.constant 0 : index
    %c0_14 = arith.constant 0 : index
    %18 = vector.load %arg7[%c0_13, %c0_14] : memref<1x1xf32, #tpu.memory_space<vmem>>, vector<1x1xf32>
    %19 = vector.broadcast %18 : vector<1x1xf32> to vector<8x1xf32>
    %20 = arith.addf %17, %19 : vector<8x1xf32>
    %21 = vector.extract_strided_slice %12 {offsets = [0, 0], sizes = [8, 64], strides = [1, 1]} : vector<8x128xf32> to vector<8x64xf32>
    %22 = vector.shape_cast %20 : vector<8x1xf32> to vector<8x1xf32>
    %23 = vector.broadcast %22 : vector<8x1xf32> to vector<8x64xf32>
    %24 = tpu.concatenate %21, %23 in 1 : vector<8x64xf32>, vector<8x64xf32> -> vector<8x128xf32>
    %c0_15 = arith.constant 0 : index
    %c0_16 = arith.constant 0 : index
    %25 = vector.load %arg8[%c0_15, %c0_16] : memref<8x128xf32, #tpu.memory_space<vmem>>, vector<8x128xf32>
    tpu.vector_store %arg8[%c0_15, %c0_16], %24 {strides = array<i32>} : memref<8x128xf32, #tpu.memory_space<vmem>>, vector<8x128xf32>,
    return
  }
  func.func @transform_0(%arg0: i32) -> (i32, i32) {
    %c0_i32 = arith.constant 0 : i32
    %c0_i32_0 = arith.constant 0 : i32
    return %arg0, %c0_i32 : i32, i32
  }
  func.func @transform_1(%arg0: i32) -> (i32, i32) {
    %c0_i32 = arith.constant 0 : i32
    %c0_i32_0 = arith.constant 0 : i32
    %c0_i32_1 = arith.constant 0 : i32
    return %c0_i32, %c0_i32_0 : i32, i32
  }
  func.func @transform_2(%arg0: i32) -> (i32, i32) {
    %c0_i32 = arith.constant 0 : i32
    %c0_i32_0 = arith.constant 0 : i32
    %c0_i32_1 = arith.constant 0 : i32
    return %c0_i32, %c0_i32_0 : i32, i32
  }
  func.func @transform_3(%arg0: i32) -> (i32, i32) {
    %c0_i32 = arith.constant 0 : i32
    %c0_i32_0 = arith.constant 0 : i32
    %c0_i32_1 = arith.constant 0 : i32
    return %c0_i32, %c0_i32_0 : i32, i32
  }
  func.func @transform_4(%arg0: i32) -> (i32, i32) {
    %c0_i32 = arith.constant 0 : i32
    %c0_i32_0 = arith.constant 0 : i32
    %c0_i32_1 = arith.constant 0 : i32
    return %c0_i32, %c0_i32_0 : i32, i32
  }
  func.func @transform_5(%arg0: i32) -> (i32, i32) {
    %c0_i32 = arith.constant 0 : i32
    %c0_i32_0 = arith.constant 0 : i32
    %c0_i32_1 = arith.constant 0 : i32
    return %c0_i32, %c0_i32_0 : i32, i32
  }
  func.func @transform_6(%arg0: i32) -> (i32, i32) {
    %c0_i32 = arith.constant 0 : i32
    %c0_i32_0 = arith.constant 0 : i32
    %c0_i32_1 = arith.constant 0 : i32
    return %c0_i32, %c0_i32_0 : i32, i32
  }
  func.func @transform_7(%arg0: i32) -> (i32, i32) {
    %c0_i32 = arith.constant 0 : i32
    %c0_i32_0 = arith.constant 0 : i32
    return %arg0, %c0_i32 : i32, i32
  }
}

</mosaic_0001>

<llo_original>
// kernel: mlp_base_forward.1
$region0: #{mlp_base_forward.1}
  #allocation0 [shape = 'u32[]', space=smem, size = 0x4, offset = 0x4, fixed_abs, tag = 'smem constant byte address 0x4 - core index']
  #allocation1 [shape = 'u32[144,128]{1,0:T(1,128)}', space=vmem, size = 0x12000, scoped, tag = 'internal scratch']
  #allocation2 [shape = 'f32[1,1]{1,0:T(1,128)S(1)}', space=vmem, size = 0x200, scoped, tag = 'scoped memory for mlp_base_forward.1']
  %s0 = inlined_call_operand.vmem [shape: f32[8,32], index: 0, kind: input, shape index: {}]
  %s1 = inlined_call_operand.vmem [shape: f32[32,128], index: 1, kind: input, shape index: {}]
  %s2 = inlined_call_operand.vmem [shape: f32[1,128], index: 2, kind: input, shape index: {}]
  %s3 = inlined_call_operand.vmem [shape: f32[128,128], index: 3, kind: input, shape index: {}]
  %s4 = inlined_call_operand.vmem [shape: f32[1,128], index: 4, kind: input, shape index: {}]
  %s5 = inlined_call_operand.vmem [shape: f32[1,128], index: 5, kind: input, shape index: {}]
  %s6 = inlined_call_operand.<no memory space> [shape: f32[1,1], index: 6, kind: input, shape index: {}]
  %s7 = inlined_call_operand.vmem [shape: f32[8,128], index: 7, kind: output, shape index: {}]
  %s8 = sld [smem:[#allocation0]]
  $region38: #{mlp_base_forward.1} parent=0
    _
  %s10 = ssub.s32 1, %s8
  %s11 = scalar_select 0, %s10, %s8
  %v12 = vstv %s6
  %13 = vst [vmem:[#allocation2] sm:$0x1] %v12
  // Predicated region
  $region2: #{mlp_base_forward.1} parent=0 // pred_check
    _
  $region3: #{mlp_base_forward.1} parent=0 // pred_check_branch
    %15 = sbr.rel (0) target = $region5
  $region4: #{mlp_base_forward.1} parent=0 // pred_region
    _
  $region5: #{mlp_base_forward.1} parent=0 // pred_fallthru
    _
  // Predicated region
  $region6: #{mlp_base_forward.1} parent=0 // pred_check
    _
  $region7: #{mlp_base_forward.1} parent=0 // pred_check_branch
    %17 = sbr.rel (0) target = $region9
  $region8: #{mlp_base_forward.1} parent=0 // pred_region
    _
  $region9: #{mlp_base_forward.1} parent=0 // pred_fallthru
    _
  // Predicated region
  $region10: #{mlp_base_forward.1} parent=0 // pred_check
    _
  $region11: #{mlp_base_forward.1} parent=0 // pred_check_branch
    %19 = sbr.rel (0) target = $region13
  $region12: #{mlp_base_forward.1} parent=0 // pred_region
    _
  $region13: #{mlp_base_forward.1} parent=0 // pred_fallthru
    _
  // Predicated region
  $region14: #{mlp_base_forward.1} parent=0 // pred_check
    _
  $region15: #{mlp_base_forward.1} parent=0 // pred_check_branch
    %21 = sbr.rel (0) target = $region17
  $region16: #{mlp_base_forward.1} parent=0 // pred_region
    _
  $region17: #{mlp_base_forward.1} parent=0 // pred_fallthru
    _
  // Predicated region
  $region18: #{mlp_base_forward.1} parent=0 // pred_check
    _
  $region19: #{mlp_base_forward.1} parent=0 // pred_check_branch
    %23 = sbr.rel (0) target = $region21
  $region20: #{mlp_base_forward.1} parent=0 // pred_region
    _
  $region21: #{mlp_base_forward.1} parent=0 // pred_fallthru
    _
  // Predicated region
  $region22: #{mlp_base_forward.1} parent=0 // pred_check
    _
  $region23: #{mlp_base_forward.1} parent=0 // pred_check_branch
    %25 = sbr.rel (0) target = $region25
  $region24: #{mlp_base_forward.1} parent=0 // pred_region
    _
  $region25: #{mlp_base_forward.1} parent=0 // pred_fallthru
    _
  // Predicated region
  $region26: #{mlp_base_forward.1} parent=0 // pred_check
    _
  $region27: #{mlp_base_forward.1} parent=0 // pred_check_branch
    %27 = sbr.rel (0) target = $region29
  $region28: #{mlp_base_forward.1} parent=0 // pred_region
    _
  $region29: #{mlp_base_forward.1} parent=0 // pred_fallthru
    _
  %v28 = vld [vmem:[%s0] sm:$0xff]
  %v29 = vld [vmem:[%s1] sm:$0xff]
  %v30 = vld [vmem:[%s1 + $0x8] sm:$0xff]
  %v31 = vld [vmem:[%s1 + $0x10] sm:$0xff]
  %v32 = vld [vmem:[%s1 + $0x18] sm:$0xff]
  %v33 = vld [vmem:[%s2] sm:$0x1]
  %v35 = vlaneseq
  %v36 = vshrl.u32 %v35, 7
  %v37 = vsub.s32 0, %v36
  %v38 = vrot.slane %v33, %v37
  %vm40 = vcmask 261120
  %v42 = vsel %vm40, %v28, 0
  %44 = vmatprep.subr.mxu0 0.0
  %45 = vmatpush1.msra.mxu0 0.0
  %46 = vmatprep.subr.mxu0 0.0
  %47 = vmatpush1.msra.mxu0 0.0
  %48 = vmatprep.subr.mxu0 0.0
  %49 = vmatpush1.msra.mxu0 0.0
  %50 = vmatprep.subr.mxu0 0.0
  %51 = vmatpush1.msra.mxu0 0.0
  %52 = vmatprep.subr.mxu0 0.0
  %53 = vmatpush1.msra.mxu0 0.0
  %54 = vmatprep.subr.mxu0 0.0
  %55 = vmatpush1.msra.mxu0 0.0
  %56 = vmatprep.subr.mxu0 0.0
  %57 = vmatpush1.msra.mxu0 0.0
  %58 = vmatprep.subr.mxu0 0.0
  %59 = vmatpush1.msra.mxu0 0.0
  %60 = vmatprep.subr.mxu0 0.0
  %61 = vmatpush1.msra.mxu0 0.0
  %62 = vmatprep.subr.mxu0 0.0
  %63 = vmatpush1.msra.mxu0 0.0
  %64 = vmatprep.subr.mxu0 0.0
  %65 = vmatpush1.msra.mxu0 0.0
  %66 = vmatprep.subr.mxu0 0.0
  %67 = vmatpush1.msra.mxu0 0.0
  %68 = vmatprep.subr.mxu0 0.0
  %69 = vmatpush1.msra.mxu0 %v32
  %70 = vmatprep.subr.mxu0 0.0
  %71 = vmatpush1.msra.mxu0 %v31
  %72 = vmatprep.subr.mxu0 0.0
  %73 = vmatpush1.msra.mxu0 %v30
  %74 = vmatprep.subr.mxu0 0.0
  %75 = vmatpush1.msra.mxu0 %v29
  %76 = vmatprep.subr.mxu0 0.0
  %77 = vmatpush2.msra.mxu0 0.0
  %78 = vmatprep.subr.mxu0 0.0
  %79 = vmatpush2.msra.mxu0 0.0
  %80 = vmatprep.subr.mxu0 0.0
  %81 = vmatpush2.msra.mxu0 0.0
  %82 = vmatprep.subr.mxu0 0.0
  %83 = vmatpush2.msra.mxu0 0.0
  %84 = vmatprep.subr.mxu0 0.0
  %85 = vmatpush2.msra.mxu0 0.0
  %86 = vmatprep.subr.mxu0 0.0
  %87 = vmatpush2.msra.mxu0 0.0
  %88 = vmatprep.subr.mxu0 0.0
  %89 = vmatpush2.msra.mxu0 0.0
  %90 = vmatprep.subr.mxu0 0.0
  %91 = vmatpush2.msra.mxu0 0.0
  %92 = vmatprep.subr.mxu0 0.0
  %93 = vmatpush2.msra.mxu0 0.0
  %94 = vmatprep.subr.mxu0 0.0
  %95 = vmatpush2.msra.mxu0 0.0
  %96 = vmatprep.subr.mxu0 0.0
  %97 = vmatpush2.msra.mxu0 0.0
  %98 = vmatprep.subr.mxu0 0.0
  %99 = vmatpush2.msra.mxu0 0.0
  %100 = vmatprep.subr.mxu0 0.0
  %101 = vmatpush2.msra.mxu0 0.0
  %102 = vmatprep.subr.mxu0 0.0
  %103 = vmatpush2.msra.mxu0 0.0
  %104 = vmatprep.subr.mxu0 0.0
  %105 = vmatpush2.msra.mxu0 0.0
  %106 = vmatprep.subr.mxu0 0.0
  %107 = vmatpush2.msra.mxu0 0.0
  %108 = vmatprep.mubr.f32.mxu0 0.0
  %109 = vmatmul.mubr.f32.gmra.mxu0 %v42
  %v110 = vpop.f32.mrf.mxu0
  %v111 = vadd.f32 %v38, %v110
  %v112 = vpop.f32.mrf.mxu0
  %113 = vdwg.mxu0
  %v114 = vtanh.pop %v111
  %v115 = vld [vmem:[%s3] sm:$0xff]
  %v116 = vld [vmem:[%s3 + $0x8] sm:$0xff]
  %v117 = vld [vmem:[%s3 + $0x10] sm:$0xff]
  %v118 = vld [vmem:[%s3 + $0x18] sm:$0xff]
  %v119 = vld [vmem:[%s3 + $0x20] sm:$0xff]
  %v120 = vld [vmem:[%s3 + $0x28] sm:$0xff]
  %v121 = vld [vmem:[%s3 + $0x30] sm:$0xff]
  %v122 = vld [vmem:[%s3 + $0x38] sm:$0xff]
  %v123 = vld [vmem:[%s3 + $0x40] sm:$0xff]
  %v124 = vld [vmem:[%s3 + $0x48] sm:$0xff]
  %v125 = vld [vmem:[%s3 + $0x50] sm:$0xff]
  %v126 = vld [vmem:[%s3 + $0x58] sm:$0xff]
  %v127 = vld [vmem:[%s3 + $0x60] sm:$0xff]
  %v128 = vld [vmem:[%s3 + $0x68] sm:$0xff]
  %v129 = vld [vmem:[%s3 + $0x70] sm:$0xff]
  %v130 = vld [vmem:[%s3 + $0x78] sm:$0xff]
  %v131 = vld [vmem:[%s4] sm:$0x1]
  %v133 = vlaneseq
  %v134 = vshrl.u32 %v133, 7
  %v135 = vsub.s32 0, %v134
  %v136 = vrot.slane %v131, %v135
  %138 = vmatprep.subr.mxu0 0.0
  %139 = vmatpush1.msra.mxu0 %v130
  %140 = vmatprep.subr.mxu0 0.0
  %141 = vmatpush1.msra.mxu0 %v129
  %142 = vmatprep.subr.mxu0 0.0
  %143 = vmatpush1.msra.mxu0 %v128
  %144 = vmatprep.subr.mxu0 0.0
  %145 = vmatpush1.msra.mxu0 %v127
  %146 = vmatprep.subr.mxu0 0.0
  %147 = vmatpush1.msra.mxu0 %v126
  %148 = vmatprep.subr.mxu0 0.0
  %149 = vmatpush1.msra.mxu0 %v125
  %150 = vmatprep.subr.mxu0 0.0
  %151 = vmatpush1.msra.mxu0 %v124
  %152 = vmatprep.subr.mxu0 0.0
  %153 = vmatpush1.msra.mxu0 %v123
  %154 = vmatprep.subr.mxu0 0.0
  %155 = vmatpush1.msra.mxu0 %v122
  %156 = vmatprep.subr.mxu0 0.0
  %157 = vmatpush1.msra.mxu0 %v121
  %158 = vmatprep.subr.mxu0 0.0
  %159 = vmatpush1.msra.mxu0 %v120
  %160 = vmatprep.subr.mxu0 0.0
  %161 = vmatpush1.msra.mxu0 %v119
  %162 = vmatprep.subr.mxu0 0.0
  %163 = vmatpush1.msra.mxu0 %v118
  %164 = vmatprep.subr.mxu0 0.0
  %165 = vmatpush1.msra.mxu0 %v117
  %166 = vmatprep.subr.mxu0 0.0
  %167 = vmatpush1.msra.mxu0 %v116
  %168 = vmatprep.subr.mxu0 0.0
  %169 = vmatpush1.msra.mxu0 %v115
  %170 = vmatprep.subr.mxu0 0.0
  %171 = vmatpush2.msra.mxu0 0.0
  %172 = vmatprep.subr.mxu0 0.0
  %173 = vmatpush2.msra.mxu0 0.0
  %174 = vmatprep.subr.mxu0 0.0
  %175 = vmatpush2.msra.mxu0 0.0
  %176 = vmatprep.subr.mxu0 0.0
  %177 = vmatpush2.msra.mxu0 0.0
  %178 = vmatprep.subr.mxu0 0.0
  %179 = vmatpush2.msra.mxu0 0.0
  %180 = vmatprep.subr.mxu0 0.0
  %181 = vmatpush2.msra.mxu0 0.0
  %182 = vmatprep.subr.mxu0 0.0
  %183 = vmatpush2.msra.mxu0 0.0
  %184 = vmatprep.subr.mxu0 0.0
  %185 = vmatpush2.msra.mxu0 0.0
  %186 = vmatprep.subr.mxu0 0.0
  %187 = vmatpush2.msra.mxu0 0.0
  %188 = vmatprep.subr.mxu0 0.0
  %189 = vmatpush2.msra.mxu0 0.0
  %190 = vmatprep.subr.mxu0 0.0
  %191 = vmatpush2.msra.mxu0 0.0
  %192 = vmatprep.subr.mxu0 0.0
  %193 = vmatpush2.msra.mxu0 0.0
  %194 = vmatprep.subr.mxu0 0.0
  %195 = vmatpush2.msra.mxu0 0.0
  %196 = vmatprep.subr.mxu0 0.0
  %197 = vmatpush2.msra.mxu0 0.0
  %198 = vmatprep.subr.mxu0 0.0
  %199 = vmatpush2.msra.mxu0 0.0
  %200 = vmatprep.subr.mxu0 0.0
  %201 = vmatpush2.msra.mxu0 0.0
  %202 = vmatprep.mubr.f32.mxu0 0.0
  %203 = vmatmul.mubr.f32.gmra.mxu0 %v114
  %v204 = vpop.f32.mrf.mxu0
  %v205 = vadd.f32 %v136, %v204
  %v206 = vpop.f32.mrf.mxu0
  %207 = vdwg.mxu0
  %v208 = vtanh.pop %v205
  %v209 = vld [vmem:[%s5] sm:$0x1]
  %v211 = vlaneseq
  %v212 = vshrl.u32 %v211, 7
  %v213 = vsub.s32 0, %v212
  %v214 = vrot.slane %v209, %v213
  %v216 = vmul.f32 %v208, %v214
  %217 = vadd.xlane.f32.xlu0 %v216
  %v218 = vpop.xlane.xlu0 %217
  %v219 = vld [vmem:[#allocation2] sm:$0x1]
  %v221 = vlaneseq
  %v222 = vshrl.u32 %v221, 7
  %v223 = vsub.s32 0, %v222
  %v224 = vrot.slane %v219, %v223
  %v226 = vadd.f32 %v218, %v224
  %228 = vset.pattern.permute.xlu0 0
  %229 = vperm.xlu0 %228, %v226
  %v230 = vpop.permute.xlu0 %229
  %vm232 = vcmask 523264
  %v233 = vsel %vm232, %v208, %v230
  %234 = vst [vmem:[%s7] sm:$0xff] %v233
  // Predicated region
  $region30: #{mlp_base_forward.1} parent=0 // pred_check
    _
  $region31: #{mlp_base_forward.1} parent=0 // pred_check_branch
    %236 = sbr.rel (0) target = $region33
  $region32: #{mlp_base_forward.1} parent=0 // pred_region
    _
  $region33: #{mlp_base_forward.1} parent=0 // pred_fallthru
    _
  // Predicated region
  $region34: #{mlp_base_forward.1} parent=0 // pred_check
    _
  $region35: #{mlp_base_forward.1} parent=0 // pred_check_branch
    %238 = sbr.rel (0) target = $region37
  $region36: #{mlp_base_forward.1} parent=0 // pred_region
    _
  $region37: #{mlp_base_forward.1} parent=0 // pred_fallthru
    _

</llo_original>
